<compile_context>
chip_gen: v7x
topology: tpu7x:2x2x1
jax: 0.10.0
libtpu: 0.0.40
codegen_flags: <defaults>
</compile_context>

<pallas_src>
import functools
import math

import jax
import jax.numpy as jnp
from jax.experimental import pallas as pl
from jax.experimental.pallas import tpu as pltpu

_LANES = 128
_TARGET_BLOCK_BYTES = 2 * 1024 * 1024   # per input block (x2 for double buffering)
_MAX_TILE_ROWS = 4096


def _round_up(x, m):
    return ((x + m - 1) // m) * m


def _sublane_multiple(dtype):
    return {4: 8, 2: 16, 1: 32}.get(jnp.dtype(dtype).itemsize, 8)


def _pow_static(x, beta):
    """x ** beta, specialised at trace time (jnp.power => exp+log on the EUP)."""
    b = float(beta)
    if b == 0.0:
        return jnp.ones_like(x)
    if b == 1.0:
        return x
    if b == 2.0:
        return x * x
    if b == 3.0:
        return x * x * x
    if b == 4.0:
        x2 = x * x
        return x2 * x2
    return jnp.power(x, b)


def _focal_kernel(logits_ref, targets_ref, out_ref, *, alpha, beta, eps,
                  reduction, is_binary, total_valid, tile_rows, needs_mask):
    i = pl.program_id(0)
    x = logits_ref[...].astype(jnp.float32)
    rows = x.shape[0]

    if is_binary:
        # Lane-dense [tile_rows, 128] slab of the flattened batch.
        t = targets_ref[...].astype(jnp.float32)
        p = jax.nn.sigmoid(x)
        p_t = p * t + (1.0 - p) * (1.0 - t)
        p_t = jnp.clip(p_t, eps, 1.0 - eps)
        log_p_t = jnp.log(p_t)
        one_minus_p_t = 1.0 - p_t
    else:
        # log-softmax gather of the target class.
        n_cls = x.shape[1]
        tgt = targets_ref[...].astype(jnp.int32)                     # [T, 1]
        m = jnp.max(x, axis=1, keepdims=True)                        # [T, 1]
        xs = x - m
        lse = jnp.log(jnp.sum(jnp.exp(xs), axis=1, keepdims=True))   # [T, 1]
        cls = jax.lax.broadcasted_iota(jnp.int32, (rows, n_cls), 1)
        x_tgt = jnp.sum(jnp.where(cls == tgt, xs, 0.0),
                        axis=1, keepdims=True)                       # [T, 1]
        # clip(p_t, eps, 1-eps) expressed on log_p_t (1 - eps == 1 in f32).
        log_p_t = jnp.clip(x_tgt - lse, math.log(eps), 0.0)
        one_minus_p_t = 1.0 - jnp.exp(log_p_t)

    focal = (-alpha) * _pow_static(one_minus_p_t, beta) * log_p_t

    if reduction == "none":
        out_ref[...] = focal
        return

    # Mask rows/elements beyond the true batch (partial blocks / lane padding).
    # Skipped entirely when the wrapper proved there is no padding.
    if needs_mask:
        if is_binary:
            r = jax.lax.broadcasted_iota(jnp.int32, focal.shape, 0)
            l = jax.lax.broadcasted_iota(jnp.int32, focal.shape, 1)
            gidx = i * (tile_rows * focal.shape[1]) + r * focal.shape[1] + l
        else:
            gidx = jax.lax.broadcasted_iota(jnp.int32, focal.shape, 0) \
                + i * tile_rows
        focal = jnp.where(gidx < total_valid, focal, 0.0)

    @pl.when(i == 0)
    def _init():
        out_ref[...] = jnp.zeros_like(out_ref)

    out_ref[...] += jnp.sum(focal, keepdims=True)

    if reduction == "mean":
        @pl.when(i == pl.num_programs(0) - 1)
        def _finalize():
            out_ref[...] = out_ref[...] / jnp.float32(total_valid)


def focal_loss(inputs, targets, *, alpha=1.0, beta=1.0, reduction="mean",
               eps=1e-12):
    """JAX/Pallas equivalent of FocalLoss.forward.

    inputs:  [B, C] logits (C == 1 => binary / sigmoid branch)
    targets: [B] labels (class indices, or 0/1 for binary)
    """
    if reduction not in ("mean", "sum", "none"):
        raise ValueError(f"unknown reduction: {reduction!r}")
    B, C = inputs.shape
    is_binary = (C == 1)
    sub = _sublane_multiple(inputs.dtype)

    if is_binary:
        # Repack [B, 1] lane-dense: pad to a multiple of sub*128, view [rows, 128].
        pad_to = _round_up(max(B, 1), sub * _LANES)
        logits2d = jnp.pad(inputs.reshape(B), (0, pad_to - B)).reshape(-1, _LANES)
        targets2d = jnp.pad(targets.reshape(B).astype(jnp.float32),
                            (0, pad_to - B)).reshape(-1, _LANES)
        n_rows = logits2d.shape[0]
        cols = _LANES
        t_cols = _LANES
        row_bytes = _LANES * jnp.dtype(inputs.dtype).itemsize
    else:
        logits2d = inputs                                   # keep HBM dtype
        targets2d = targets.reshape(B, 1).astype(jnp.int32)
        n_rows = B
        cols = C
        t_cols = 1
        row_bytes = C * jnp.dtype(inputs.dtype).itemsize

    tile_rows = max(sub, min(_MAX_TILE_ROWS,
                             _TARGET_BLOCK_BYTES // max(row_bytes, 1)))
    tile_rows -= tile_rows % sub
    tile_rows = max(tile_rows, sub)
    tile_rows = min(tile_rows, _round_up(n_rows, sub))
    grid = (pl.cdiv(n_rows, tile_rows),)

    # Does the grid cover more elements than the true batch?  (partial last
    # block and/or lane padding)  Static => masking is compiled out when false.
    covered = grid[0] * tile_rows * (cols if is_binary else 1)
    needs_mask = covered != B

    kernel = functools.partial(
        _focal_kernel, alpha=float(alpha), beta=float(beta), eps=float(eps),
        reduction=reduction, is_binary=is_binary, total_valid=B,
        tile_rows=tile_rows, needs_mask=needs_mask)

    in_specs = [
        pl.BlockSpec((tile_rows, cols), lambda i: (i, 0)),
        pl.BlockSpec((tile_rows, t_cols), lambda i: (i, 0)),
    ]

    if reduction == "none":
        out_cols = _LANES if is_binary else 1
        out_shape = jax.ShapeDtypeStruct((n_rows, out_cols), jnp.float32)
        out_specs = pl.BlockSpec((tile_rows, out_cols), lambda i: (i, 0))
        semantics = ("parallel",)
    else:
        out_shape = jax.ShapeDtypeStruct((1, 1), jnp.float32)
        out_specs = pl.BlockSpec((1, 1), lambda i: (0, 0))
        semantics = ("arbitrary",)

    out = pl.pallas_call(
        kernel,
        grid=grid,
        in_specs=in_specs,
        out_specs=out_specs,
        out_shape=out_shape,
        compiler_params=pltpu.CompilerParams(dimension_semantics=semantics),
    )(logits2d, targets2d)

    if reduction == "none":
        if is_binary:
            return out.reshape(-1)[:B]
        return out[:, 0]
    return out[0, 0]


def _ref_focal_loss(inputs, targets, alpha=1.0, beta=1.0, reduction="mean",
                    eps=1e-12):
    """Pure-JAX reference mirroring the PyTorch module."""
    x = inputs.astype(jnp.float32)
    if x.shape[1] == 1:
        t = targets.astype(jnp.float32)
        probs = jax.nn.sigmoid(x)[:, 0]
        p_t = probs * t + (1.0 - probs) * (1.0 - t)
    else:
        probs = jax.nn.softmax(x, axis=1)
        one_hot = jax.nn.one_hot(targets, x.shape[1], dtype=jnp.float32)
        p_t = jnp.sum(probs * one_hot, axis=1)
    p_t = jnp.clip(p_t, eps, 1.0 - eps)
    fl = -alpha * (1.0 - p_t) ** beta * jnp.log(p_t)
    if reduction == "mean":
        return jnp.mean(fl)
    if reduction == "sum":
        return jnp.sum(fl)
    return fl


if __name__ == "__main__":
    key = jax.random.PRNGKey(0)
    k1, k2, k3, k4, k5 = jax.random.split(key, 5)

    # --- multi-class: [batch_size, num_classes], beta=2 exercises pow specialisation
    B, C = 8, 4
    logits = jax.random.normal(k1, (B, C), dtype=jnp.float32)
    labels = jax.random.randint(k2, (B,), 0, C, dtype=jnp.int32)
    for red in ("mean", "sum", "none"):
        got = jax.block_until_ready(
            focal_loss(logits, labels, alpha=1.0, beta=2.0, reduction=red))
        ref = _ref_focal_loss(logits, labels, alpha=1.0, beta=2.0, reduction=red)
        assert jnp.allclose(got, ref, rtol=1e-5, atol=1e-5), (red, got, ref)

    # --- multi-class, batch not a multiple of 8 (partial block + in-kernel masking)
    B2, C2 = 12, 5
    logits2 = jax.random.normal(k3, (B2, C2), dtype=jnp.float32)
    labels2 = jax.random.randint(k4, (B2,), 0, C2, dtype=jnp.int32)
    got2 = jax.block_until_ready(focal_loss(logits2, labels2, reduction="mean"))
    ref2 = _ref_focal_loss(logits2, labels2, reduction="mean")
    assert jnp.allclose(got2, ref2, rtol=1e-5, atol=1e-5), (got2, ref2)

    # --- multi-class, bf16 logits stay bf16 in HBM (f32 upcast happens in-kernel)
    logits_bf16 = jax.random.normal(k5, (16, 8), dtype=jnp.bfloat16)
    labels_bf16 = jax.random.randint(k2, (16,), 0, 8, dtype=jnp.int32)
    got3 = jax.block_until_ready(
        focal_loss(logits_bf16, labels_bf16, reduction="mean"))
    ref3 = _ref_focal_loss(logits_bf16, labels_bf16, reduction="mean")
    assert jnp.allclose(got3, ref3, rtol=1e-3, atol=1e-3), (got3, ref3)

    # --- binary: [batch_size, 1] logits, 0/1 targets (lane-dense repack path)
    bin_logits = jax.random.normal(k3, (B, 1), dtype=jnp.float32)
    bin_labels = (labels % 2).astype(jnp.int32)
    for red in ("mean", "sum", "none"):
        gotb = jax.block_until_ready(
            focal_loss(bin_logits, bin_labels, reduction=red))
        refb = _ref_focal_loss(bin_logits, bin_labels, reduction=red)
        assert jnp.allclose(gotb, refb, rtol=1e-5, atol=1e-5), (red, gotb, refb)

    print("KERNEL_OK")
</pallas_src>

<mosaic_0001>
module attributes {stable_mosaic.version = 11 : i64} {
  func.func @_focal_kernel(%arg0: i32, %arg1: memref<8x4xf32, #tpu.memory_space<vmem>>, %arg2: memref<8x1xi32, #tpu.memory_space<vmem>>, %arg3: memref<1x1xf32, #tpu.memory_space<vmem>>) attributes {dimension_semantics = [#tpu.dimension_semantics<arbitrary>], iteration_bounds = array<i64: 1>, scalar_prefetch = 0 : i64, scratch_operands = 0 : i64, tpu.core_type = #tpu.core_type<tc>, window_params = [{transform_indices = @transform_0, window_bounds = array<i64: 8, 4>}, {transform_indices = @transform_1, window_bounds = array<i64: 8, 1>}, {pipeline_mode = #tpu.pipeline_mode<synchronous>, transform_indices = @transform_2, window_bounds = array<i64: 1, 1>}]} {
    %c0 = arith.constant 0 : index
    %c0_0 = arith.constant 0 : index
    %0 = vector.load %arg1[%c0, %c0_0] : memref<8x4xf32, #tpu.memory_space<vmem>>, vector<8x4xf32>
    %c0_1 = arith.constant 0 : index
    %c0_2 = arith.constant 0 : index
    %1 = vector.load %arg2[%c0_1, %c0_2] : memref<8x1xi32, #tpu.memory_space<vmem>>, vector<8x1xi32>
    %cst = arith.constant dense<0xFF800000> : vector<8xf32>
    %2 = vector.multi_reduction <maximumf>, %0, %cst [1] : vector<8x4xf32> to vector<8xf32>
    %3 = vector.shape_cast %2 : vector<8xf32> to vector<8x1xf32>
    %4 = vector.broadcast %3 : vector<8x1xf32> to vector<8x4xf32>
    %5 = arith.subf %0, %4 : vector<8x4xf32>
    %6 = math.exp %5 : vector<8x4xf32>
    %cst_3 = arith.constant dense<0.000000e+00> : vector<8xf32>
    %7 = vector.multi_reduction <add>, %6, %cst_3 [1] : vector<8x4xf32> to vector<8xf32>
    %8 = vector.shape_cast %7 : vector<8xf32> to vector<8x1xf32>
    %9 = math.log %8 : vector<8x1xf32>
    %10 = tpu.iota {dimensions = array<i32: 1>} : vector<8x4xi32>
    %11 = vector.broadcast %1 : vector<8x1xi32> to vector<8x4xi32>
    %12 = arith.cmpi eq, %10, %11 : vector<8x4xi32>
    %cst_4 = arith.constant 0.000000e+00 : f32
    %13 = vector.broadcast %cst_4 : f32 to vector<8x4xf32>
    %14 = arith.select %12, %5, %13 : vector<8x4xi1>, vector<8x4xf32>
    %cst_5 = arith.constant dense<0.000000e+00> : vector<8xf32>
    %15 = vector.multi_reduction <add>, %14, %cst_5 [1] : vector<8x4xf32> to vector<8xf32>
    %16 = vector.shape_cast %15 : vector<8xf32> to vector<8x1xf32>
    %17 = arith.subf %16, %9 : vector<8x1xf32>
    %cst_6 = arith.constant -27.6310215 : f32
    %cst_7 = arith.constant 0.000000e+00 : f32
    %18 = vector.broadcast %cst_6 : f32 to vector<8x1xf32>
    %19 = arith.maximumf %18, %17 : vector<8x1xf32>
    %20 = vector.broadcast %cst_7 : f32 to vector<8x1xf32>
    %21 = arith.minimumf %20, %19 : vector<8x1xf32>
    %22 = math.exp %21 : vector<8x1xf32>
    %cst_8 = arith.constant 1.000000e+00 : f32
    %23 = vector.broadcast %cst_8 : f32 to vector<8x1xf32>
    %24 = arith.subf %23, %22 : vector<8x1xf32>
    %25 = arith.mulf %24, %24 : vector<8x1xf32>
    %cst_9 = arith.constant -1.000000e+00 : f32
    %26 = vector.broadcast %cst_9 : f32 to vector<8x1xf32>
    %27 = arith.mulf %26, %25 : vector<8x1xf32>
    %28 = arith.mulf %27, %21 : vector<8x1xf32>
    %c0_i32 = arith.constant 0 : i32
    %29 = arith.cmpi eq, %arg0, %c0_i32 : i32
    %30 = arith.extui %29 : i1 to i32
    %c0_i32_10 = arith.constant 0 : i32
    %31 = arith.cmpi ne, %30, %c0_i32_10 : i32
    scf.if %31 {
      %cst_18 = arith.constant 0.000000e+00 : f32
      %43 = vector.broadcast %cst_18 : f32 to vector<1x1xf32>
      %c0_19 = arith.constant 0 : index
      %c0_20 = arith.constant 0 : index
      %44 = vector.load %arg3[%c0_19, %c0_20] : memref<1x1xf32, #tpu.memory_space<vmem>>, vector<1x1xf32>
      tpu.vector_store %arg3[%c0_19, %c0_20], %43 {strides = array<i32>} : memref<1x1xf32, #tpu.memory_space<vmem>>, vector<1x1xf32>,
    } else {
    }
    %c0_11 = arith.constant 0 : index
    %c0_12 = arith.constant 0 : index
    %32 = vector.load %arg3[%c0_11, %c0_12] : memref<1x1xf32, #tpu.memory_space<vmem>>, vector<1x1xf32>
    %33 = vector.shape_cast %28 : vector<8x1xf32> to vector<1x8x1xf32>
    %cst_13 = arith.constant dense<0.000000e+00> : vector<1xf32>
    %34 = vector.multi_reduction <add>, %33, %cst_13 [1, 2] : vector<1x8x1xf32> to vector<1xf32>
    %35 = vector.shape_cast %34 : vector<1xf32> to vector<1x1x1xf32>
    %36 = vector.extract %35[0, 0, 0] : f32 from vector<1x1x1xf32>
    %37 = vector.broadcast %36 : f32 to vector<1x1xf32>
    %38 = arith.addf %32, %37 : vector<1x1xf32>
    %c0_14 = arith.constant 0 : index
    %c0_15 = arith.constant 0 : index
    %39 = vector.load %arg3[%c0_14, %c0_15] : memref<1x1xf32, #tpu.memory_space<vmem>>, vector<1x1xf32>
    tpu.vector_store %arg3[%c0_14, %c0_15], %38 {strides = array<i32>} : memref<1x1xf32, #tpu.memory_space<vmem>>, vector<1x1xf32>,
    %c0_i32_16 = arith.constant 0 : i32
    %40 = arith.cmpi eq, %arg0, %c0_i32_16 : i32
    %41 = arith.extui %40 : i1 to i32
    %c0_i32_17 = arith.constant 0 : i32
    %42 = arith.cmpi ne, %41, %c0_i32_17 : i32
    scf.if %42 {
      %c0_18 = arith.constant 0 : index
      %c0_19 = arith.constant 0 : index
      %43 = vector.load %arg3[%c0_18, %c0_19] : memref<1x1xf32, #tpu.memory_space<vmem>>, vector<1x1xf32>
      %cst_20 = arith.constant 8.000000e+00 : f32
      %44 = vector.broadcast %cst_20 : f32 to vector<1x1xf32>
      %45 = arith.divf %43, %44 : vector<1x1xf32>
      %c0_21 = arith.constant 0 : index
      %c0_22 = arith.constant 0 : index
      %46 = vector.load %arg3[%c0_21, %c0_22] : memref<1x1xf32, #tpu.memory_space<vmem>>, vector<1x1xf32>
      tpu.vector_store %arg3[%c0_21, %c0_22], %45 {strides = array<i32>} : memref<1x1xf32, #tpu.memory_space<vmem>>, vector<1x1xf32>,
    } else {
    }
    return
  }
  func.func @transform_0(%arg0: i32) -> (i32, i32) {
    %c0_i32 = arith.constant 0 : i32
    %c0_i32_0 = arith.constant 0 : i32
    return %arg0, %c0_i32 : i32, i32
  }
  func.func @transform_1(%arg0: i32) -> (i32, i32) {
    %c0_i32 = arith.constant 0 : i32
    %c0_i32_0 = arith.constant 0 : i32
    return %arg0, %c0_i32 : i32, i32
  }
  func.func @transform_2(%arg0: i32) -> (i32, i32) {
    %c0_i32 = arith.constant 0 : i32
    %c0_i32_0 = arith.constant 0 : i32
    %c0_i32_1 = arith.constant 0 : i32
    return %c0_i32, %c0_i32_0 : i32, i32
  }
}

</mosaic_0001>

<llo_original>
// kernel: tpu_custom_call.1
$region0: #{tpu_custom_call.1}
  #allocation0 [shape = 'u32[]', space=smem, size = 0x4, offset = 0x4, fixed_abs, tag = 'smem constant byte address 0x4 - core index']
  #allocation1 [shape = 'u32[144,128]{1,0:T(1,128)}', space=vmem, size = 0x12000, scoped, tag = 'internal scratch']
  %s0 = inlined_call_operand.vmem [shape: f32[8,4], index: 0, kind: input, shape index: {}]
  %s1 = inlined_call_operand.vmem [shape: s32[8,1], index: 1, kind: input, shape index: {}]
  %s2 = inlined_call_operand.hbm [shape: f32[1,1], index: 2, kind: output, shape index: {}]
  %s3 = sld [smem:[#allocation0]]
  $region26: #{tpu_custom_call.1} parent=0
    _
  %s5 = ssub.s32 1, %s3
  %s6 = scalar_select 0, %s5, %s3
  $region1: #{tpu_custom_call.1} parent=0
    #allocation2 [shape = 'u8[512]{0}', space=vmem, size = 0x400, scoped, tag = 'output window, operand 0, single buffered']
    #allocation3 [shape = 's32[1]{0}', space=sflag, size = 0x4, scoped, tag = 'scoped memory for tpu_custom_call.1']
    %7 = vsyncpa [#allocation3], 0
    // Predicated region
    $region2: #{tpu_custom_call.1} parent=1 // pred_check
      _
    $region3: #{tpu_custom_call.1} parent=1 // pred_check_branch
      %9 = sbr.rel (0) target = $region5
    $region4: #{tpu_custom_call.1} parent=1 // pred_region
      _
    $region5: #{tpu_custom_call.1} parent=1 // pred_fallthru
      _
    // Predicated region
    $region6: #{tpu_custom_call.1} parent=1 // pred_check
      _
    $region7: #{tpu_custom_call.1} parent=1 // pred_check_branch
      %11 = sbr.rel (0) target = $region9
    $region8: #{tpu_custom_call.1} parent=1 // pred_region
      _
    $region9: #{tpu_custom_call.1} parent=1 // pred_fallthru
      _
    %v12 = vld [vmem:[%s0] sm:$0xff]
    %v13 = vld [vmem:[%s1] sm:$0xff]
    %vm14 = vcmask 31744
    %v15 = vsel %vm14, %v12, -inf
    %16 = vmax.xlane.f32.xlu0 %v15
    %v17 = vpop.xlane.xlu0 %16
    %v18 = vsub.f32 %v12, %v17
    %v19 = vmul.f32 %v18, 1.442695
    %v20 = vpow.pop %v19
    %v21 = vsel %vm14, %v20, 0.0
    %22 = vadd.xlane.f32.xlu0 %v21
    %v23 = vpop.xlane.xlu0 %22
    %v24 = vlog2.pop %v23
    %v25 = vmul.f32 %v24, 0.6931472
    %v26 = vlaneseq
    %v27 = vand.u32 %v26, 127
    %28 = vset.pattern.permute.xlu0 0
    %29 = vperm.xlu0 %28, %v13
    %v30 = vpop.permute.xlu0 %29
    %vm31 = vcmp.eq.s32.totalorder %v27, %v30
    %v32 = vsel %vm31, %v18, 0.0
    %v33 = vsel %vm14, %v32, 0.0
    %34 = vadd.xlane.f32.xlu0 %v33
    %v35 = vpop.xlane.xlu0 %34
    %v36 = vsub.f32 %v35, %v25
    %v37 = vmax.f32 %v36, -27.631021
    %v38 = vmin.f32 %v37, 0.0
    %v39 = vmul.f32 %v38, 1.442695
    %v40 = vpow.pop %v39
    %v41 = vsub.f32 1.0, %v40
    %v42 = vmul.f32 %v41, %v41
    %v43 = vmul.f32 %v42, -1.0
    %v44 = vmul.f32 %v43, %v38
    %p45 = scmp.eq.s32.totalorder 0, 0
    // Predicated region
    $region10: #{tpu_custom_call.1} parent=1 // pred_check
      %p46 = pneg %p45
    $region11: #{tpu_custom_call.1} parent=1 // pred_check_branch
      %48 = sbr.rel (%p46) target = $region13
    $region12: #{tpu_custom_call.1} parent=1 // pred_region
      %vm49 = vcmask 0
      %50 = vst.msk [vmem:[#allocation2] sm:$0x1] %vm49, 0.0
    $region13: #{tpu_custom_call.1} parent=1 // pred_fallthru
      _
    %v51 = vld [vmem:[#allocation2] sm:$0x1]
    %vm52 = vcmask 7168
    %v53 = vsel %vm52, %v44, 0.0
    %54 = vadd.xlane.f32.xlu0 %v53
    %v55 = vpop.xlane.xlu0 %54
    %v56 = vrot.slane %v55, 4
    %v57 = vadd.f32 %v55, %v56
    %v58 = vrot.slane %v57, 2
    %v59 = vadd.f32 %v57, %v58
    %v60 = vrot.slane %v59, 1
    %v61 = vadd.f32 %v59, %v60
    %s62 = vtos %v61
    %v63 = vstv %s62
    %v64 = vadd.f32 %v51, %v63
    %vm65 = vcmask 0
    %66 = vst.msk [vmem:[#allocation2] sm:$0x1] %vm65, %v64
    // Predicated region
    $region14: #{tpu_custom_call.1} parent=1 // pred_check
      %p67 = pneg %p45
    $region15: #{tpu_custom_call.1} parent=1 // pred_check_branch
      %69 = sbr.rel (%p67) target = $region17
    $region16: #{tpu_custom_call.1} parent=1 // pred_region
      %v70 = vld [vmem:[#allocation2] sm:$0x1]
      %v71 = vrcp.pop 8.0
      %v72 = vmul.f32 %v70, %v71
      %73 = vst.msk [vmem:[#allocation2] sm:$0x1] %vm65, %v72
    $region17: #{tpu_custom_call.1} parent=1 // pred_fallthru
      _
    // Predicated region
    $region18: #{tpu_custom_call.1} parent=1 // pred_check
      _
    $region19: #{tpu_custom_call.1} parent=1 // pred_check_branch
      %75 = sbr.rel (0) target = $region21
    $region20: #{tpu_custom_call.1} parent=1 // pred_region
      %s77 = ssub.s32 16, 16
      %78 = vsyncadd [#allocation3], %s77
      %s80 = sshll.u32 [#allocation2], 4
      %s81 = int_to_ptr.vmem [resolvable:$true] %s80
      %83 = dma.vmem_to_hbm [thread:$0]  %s81, 16, %s2, [#allocation3]
    $region21: #{tpu_custom_call.1} parent=1 // pred_fallthru
      _
    // Predicated region
    $region22: #{tpu_custom_call.1} parent=1 // pred_check
      _
    $region23: #{tpu_custom_call.1} parent=1 // pred_check_branch
      %85 = sbr.rel (0) target = $region25
    $region24: #{tpu_custom_call.1} parent=1 // pred_region
      %86 = dma.done [#allocation3], 16
    $region25: #{tpu_custom_call.1} parent=1 // pred_fallthru
      _
    %87 = vsyncpa [#allocation3], 1

</llo_original>
